<compile_context>
chip_gen: v6e
topology: v6e:2x2x1
jax: 0.10.0
libtpu: 0.0.40
codegen_flags: <defaults>
</compile_context>

<pallas_src>
import math
import functools

import jax
import jax.numpy as jnp
import numpy as np
from jax import lax
from jax.experimental import pallas as pl
from jax.experimental.pallas import tpu as pltpu

VMEM = pltpu.MemorySpace.VMEM


# ----------------------------------------------------------------------------
# Fused kernel: spatial embedding (VPU) + pre-pool MLP (MXU) + segment max
# ----------------------------------------------------------------------------
def pool_hidden_kernel(enc_ref,      # VMEM [N, H]  bf16  hidden states, group-dense packed
                       pos_ref,      # VMEM [N, 2]  f32   end positions, group-dense packed
                       posf_ref,     # VMEM [N, 2]  f32   group's FIRST position per row
                       valid_ref,    # VMEM [N, 1]  f32   1.0 real row / 0.0 padding row
                       ws_t_ref,     # VMEM [2, E]  f32   spatial_embedding weight, pre-T
                       bs_ref,       # VMEM [1, E]  f32   spatial_embedding bias
                       wp_h_t_ref,   # VMEM [H, H]  bf16  mlp_pre_pool weight (hidden cols), pre-T
                       wp_e_t_ref,   # VMEM [E, H]  bf16  mlp_pre_pool weight (embed cols), pre-T
                       bp_ref,       # VMEM [1, H]  f32   mlp_pre_pool bias
                       out_ref,      # VMEM [G, H]  f32
                       *, num_groups, blk):
    h = wp_h_t_ref.shape[1]

    # --- spatial embedding: K=2 contraction kept on the VPU (two broadcast FMAs) ---
    rel = pos_ref[...] - posf_ref[...]                           # [N, 2]  pos_j - pos_first(g)
    emb = jnp.maximum(rel[:, 0:1] * ws_t_ref[0:1, :]
                      + rel[:, 1:2] * ws_t_ref[1:2, :]
                      + bs_ref[...], 0.0)                        # [N, E] f32

    # --- pre-pool MLP: cat([enc, emb]) @ Wp^T == enc @ Wp_h^T + emb @ Wp_e^T ---
    # One full-batch MXU matmul per half, bf16 operands, f32 accumulation.
    feat = jnp.dot(enc_ref[...], wp_h_t_ref[...],
                   preferred_element_type=jnp.float32)
    feat = feat + jnp.dot(emb.astype(jnp.bfloat16), wp_e_t_ref[...],
                          preferred_element_type=jnp.float32)
    feat = jnp.maximum(feat + bp_ref[...], 0.0)                  # [N, H] f32

    # --- mask padding rows, per-group segment max, single contiguous store ---
    feat = jnp.where(valid_ref[...] > 0.5, feat, jnp.float32(-1e30))
    out_ref[...] = jnp.max(feat.reshape(num_groups, blk, h), axis=1)


def pool_hidden_net(hist_enc, hist_pos_batch, seq_start_end, params):
    """hist_enc [N, H], hist_pos_batch [N, 2], seq_start_end boundary list -> [G, H]."""
    ws, bs, wp, bp = params
    h_dim = wp.shape[0]
    embed = ws.shape[0]

    seq = np.asarray(seq_start_end, dtype=np.int64)
    num_groups = len(seq) - 1
    sizes = seq[1:] - seq[:-1]
    assert int(sizes.min()) >= 1, "every group must be non-empty"
    blk = max(8, -(-int(sizes.max()) // 8) * 8)       # per-group row block, multiple of 8
    n_dense = num_groups * blk

    # Host-side layout plumbing: pack each group into its own blk-row, 8-aligned slab,
    # replicate the group's first position per row, and build the validity mask.
    enc_np = np.asarray(hist_enc, dtype=np.float32)
    pos_np = np.asarray(hist_pos_batch, dtype=np.float32)
    enc_d = np.zeros((n_dense, h_dim), np.float32)
    pos_d = np.zeros((n_dense, 2), np.float32)
    posf_d = np.zeros((n_dense, 2), np.float32)
    valid = np.zeros((n_dense, 1), np.float32)
    for g in range(num_groups):
        s, e = int(seq[g]), int(seq[g + 1])
        p = e - s
        enc_d[g * blk:g * blk + p] = enc_np[s:e]
        pos_d[g * blk:g * blk + p] = pos_np[s:e]
        posf_d[g * blk:(g + 1) * blk] = pos_np[s]
        valid[g * blk:g * blk + p, 0] = 1.0

    # Weights: pre-transpose, split mlp_pre_pool weight by cat([hidden, embedding]) column
    # order, cast the MXU operands to bf16, keep biases / spatial weight in f32.
    ws_np = np.asarray(ws, np.float32)
    wp_np = np.asarray(wp, np.float32)
    ws_t = jnp.asarray(ws_np.T)                                  # [2, E]  f32
    bs2 = jnp.asarray(np.asarray(bs, np.float32).reshape(1, embed))
    wp_h_t = jnp.asarray(wp_np[:, :h_dim].T, jnp.bfloat16)       # [H, H]  hidden columns
    wp_e_t = jnp.asarray(wp_np[:, h_dim:].T, jnp.bfloat16)       # [E, H]  embedding columns
    bp2 = jnp.asarray(np.asarray(bp, np.float32).reshape(1, h_dim))

    kernel = functools.partial(pool_hidden_kernel, num_groups=num_groups, blk=blk)
    return pl.pallas_call(
        kernel,
        in_specs=[pl.BlockSpec(memory_space=VMEM)] * 9,
        out_specs=pl.BlockSpec(memory_space=VMEM),
        out_shape=jax.ShapeDtypeStruct((num_groups, h_dim), jnp.float32),
    )(jnp.asarray(enc_d, jnp.bfloat16), jnp.asarray(pos_d), jnp.asarray(posf_d),
      jnp.asarray(valid), ws_t, bs2, wp_h_t, wp_e_t, bp2)


# ----------------------------------------------------------------------------
# Parameter init (PyTorch-like uniform fan-in init) and pure-JAX reference
# ----------------------------------------------------------------------------
def linear_init(key, out_f, in_f):
    k1, k2 = jax.random.split(key)
    bound = 1.0 / math.sqrt(in_f)
    w = jax.random.uniform(k1, (out_f, in_f), jnp.float32, -bound, bound)
    b = jax.random.uniform(k2, (out_f,), jnp.float32, -bound, bound)
    return w, b


def init_params(key, embed, h_dim):
    k1, k2 = jax.random.split(key)
    ws, bs = linear_init(k1, embed, 2)                   # spatial_embedding: Linear(2, E)
    wp, bp = linear_init(k2, h_dim, embed + h_dim)       # mlp_pre_pool:      Linear(H+E, H)
    return ws, bs, wp, bp


def pool_hidden_reference(hist_enc, hist_pos_batch, seq_start_end, params):
    """Literal transcription of the PyTorch forward (full PxP pairwise construction)."""
    ws, bs, wp, bp = params
    hp = lax.Precision.HIGHEST
    outs = []
    for g in range(len(seq_start_end) - 1):
        s, e = int(seq_start_end[g]), int(seq_start_end[g + 1])
        num = e - s
        enc = hist_enc[s:e]                              # [P, H]
        pos = hist_pos_batch[s:e]                        # [P, 2]
        h1 = jnp.tile(enc, (num, 1))                     # hist_batch_num.repeat(num, 1)
        p1 = jnp.tile(pos, (num, 1))                     # hist_pos_num.repeat(num, 1)
        p2 = jnp.repeat(pos, num, axis=0)                # self.repeat(hist_pos_num, num)
        rel = p1 - p2
        emb = jnp.maximum(jnp.dot(rel, ws.T, precision=hp) + bs, 0.0)
        inp = jnp.concatenate([h1, emb], axis=1)
        feat = jnp.maximum(jnp.dot(inp, wp.T, precision=hp) + bp, 0.0)
        feat = feat.reshape(num, num, -1).max(axis=1)
        outs.append(feat[0:1])
    return jnp.concatenate(outs, axis=0)


if __name__ == "__main__":
    embedding_dim, h_dim = 64, 64                        # module defaults
    seq_start_end = [0, 3, 7, 10]                        # 3 groups of 3, 4, 3 pedestrians
    n_total = seq_start_end[-1]

    key = jax.random.PRNGKey(0)
    k1, k2, k3 = jax.random.split(key, 3)
    hist_enc = jax.random.normal(k1, (n_total, h_dim), jnp.float32)
    hist_pos_batch = jax.random.normal(k2, (n_total, 2), jnp.float32)
    params = init_params(k3, embedding_dim, h_dim)

    out = jax.block_until_ready(
        pool_hidden_net(hist_enc, hist_pos_batch, seq_start_end, params))
    ref = jax.block_until_ready(
        pool_hidden_reference(hist_enc, hist_pos_batch, seq_start_end, params))

    assert out.shape == (len(seq_start_end) - 1, h_dim), out.shape
    max_err = float(np.max(np.abs(np.asarray(out) - np.asarray(ref))))
    assert np.allclose(np.asarray(out), np.asarray(ref), rtol=2e-2, atol=2e-2), max_err
    print("KERNEL_OK")
</pallas_src>

<mosaic_0001>
module attributes {stable_mosaic.version = 11 : i64} {
  func.func @pool_hidden_kernel(%arg0: memref<24x64xbf16, #tpu.memory_space<vmem>>, %arg1: memref<24x2xf32, #tpu.memory_space<vmem>>, %arg2: memref<24x2xf32, #tpu.memory_space<vmem>>, %arg3: memref<24x1xf32, #tpu.memory_space<vmem>>, %arg4: memref<2x64xf32, #tpu.memory_space<vmem>>, %arg5: memref<1x64xf32, #tpu.memory_space<vmem>>, %arg6: memref<64x64xbf16, #tpu.memory_space<vmem>>, %arg7: memref<64x64xbf16, #tpu.memory_space<vmem>>, %arg8: memref<1x64xf32, #tpu.memory_space<vmem>>, %arg9: memref<3x64xf32, #tpu.memory_space<vmem>>) attributes {dimension_semantics = [], scalar_prefetch = 0 : i64, scratch_operands = 0 : i64, tpu.core_type = #tpu.core_type<tc>} {
    %c0 = arith.constant 0 : index
    %c0_0 = arith.constant 0 : index
    %0 = vector.load %arg1[%c0, %c0_0] : memref<24x2xf32, #tpu.memory_space<vmem>>, vector<24x2xf32>
    %c0_1 = arith.constant 0 : index
    %c0_2 = arith.constant 0 : index
    %1 = vector.load %arg2[%c0_1, %c0_2] : memref<24x2xf32, #tpu.memory_space<vmem>>, vector<24x2xf32>
    %2 = arith.subf %0, %1 : vector<24x2xf32>
    %3 = vector.extract_strided_slice %2 {offsets = [0, 0], sizes = [24, 1], strides = [1, 1]} : vector<24x2xf32> to vector<24x1xf32>
    %c0_3 = arith.constant 0 : index
    %c0_4 = arith.constant 0 : index
    %4 = vector.load %arg4[%c0_3, %c0_4] : memref<2x64xf32, #tpu.memory_space<vmem>>, vector<1x64xf32>
    %5 = vector.broadcast %3 : vector<24x1xf32> to vector<24x64xf32>
    %6 = vector.broadcast %4 : vector<1x64xf32> to vector<24x64xf32>
    %7 = arith.mulf %5, %6 : vector<24x64xf32>
    %8 = vector.extract_strided_slice %2 {offsets = [0, 1], sizes = [24, 1], strides = [1, 1]} : vector<24x2xf32> to vector<24x1xf32>
    %c1 = arith.constant 1 : index
    %c0_5 = arith.constant 0 : index
    %9 = vector.load %arg4[%c1, %c0_5] : memref<2x64xf32, #tpu.memory_space<vmem>>, vector<1x64xf32>
    %10 = vector.broadcast %8 : vector<24x1xf32> to vector<24x64xf32>
    %11 = vector.broadcast %9 : vector<1x64xf32> to vector<24x64xf32>
    %12 = arith.mulf %10, %11 : vector<24x64xf32>
    %13 = arith.addf %7, %12 : vector<24x64xf32>
    %c0_6 = arith.constant 0 : index
    %c0_7 = arith.constant 0 : index
    %14 = vector.load %arg5[%c0_6, %c0_7] : memref<1x64xf32, #tpu.memory_space<vmem>>, vector<1x64xf32>
    %15 = vector.broadcast %14 : vector<1x64xf32> to vector<24x64xf32>
    %16 = arith.addf %13, %15 : vector<24x64xf32>
    %cst = arith.constant 0.000000e+00 : f32
    %17 = vector.broadcast %cst : f32 to vector<24x64xf32>
    %18 = arith.maximumf %16, %17 : vector<24x64xf32>
    %c0_8 = arith.constant 0 : index
    %c0_9 = arith.constant 0 : index
    %19 = vector.load %arg0[%c0_8, %c0_9] : memref<24x64xbf16, #tpu.memory_space<vmem>>, vector<24x64xbf16>
    %c0_10 = arith.constant 0 : index
    %c0_11 = arith.constant 0 : index
    %20 = vector.load %arg6[%c0_10, %c0_11] : memref<64x64xbf16, #tpu.memory_space<vmem>>, vector<64x64xbf16>
    %cst_12 = arith.constant dense<0.000000e+00> : vector<24x64xf32>
    %21 = tpu.matmul %19, %20, %cst_12 {dimension_numbers = #tpu.dot_dimension_numbers<[1], [0], [0], [1], [0, 0, 1, 1], [], []>} : vector<24x64xbf16>, vector<64x64xbf16>, vector<24x64xf32> -> vector<24x64xf32>
    %22 = arith.truncf %18 : vector<24x64xf32> to vector<24x64xbf16>
    %c0_13 = arith.constant 0 : index
    %c0_14 = arith.constant 0 : index
    %23 = vector.load %arg7[%c0_13, %c0_14] : memref<64x64xbf16, #tpu.memory_space<vmem>>, vector<64x64xbf16>
    %cst_15 = arith.constant dense<0.000000e+00> : vector<24x64xf32>
    %24 = tpu.matmul %22, %23, %cst_15 {dimension_numbers = #tpu.dot_dimension_numbers<[1], [0], [0], [1], [0, 0, 1, 1], [], []>} : vector<24x64xbf16>, vector<64x64xbf16>, vector<24x64xf32> -> vector<24x64xf32>
    %25 = arith.addf %21, %24 : vector<24x64xf32>
    %c0_16 = arith.constant 0 : index
    %c0_17 = arith.constant 0 : index
    %26 = vector.load %arg8[%c0_16, %c0_17] : memref<1x64xf32, #tpu.memory_space<vmem>>, vector<1x64xf32>
    %27 = vector.broadcast %26 : vector<1x64xf32> to vector<24x64xf32>
    %28 = arith.addf %25, %27 : vector<24x64xf32>
    %cst_18 = arith.constant 0.000000e+00 : f32
    %29 = vector.broadcast %cst_18 : f32 to vector<24x64xf32>
    %30 = arith.maximumf %28, %29 : vector<24x64xf32>
    %c0_19 = arith.constant 0 : index
    %c0_20 = arith.constant 0 : index
    %31 = vector.load %arg3[%c0_19, %c0_20] : memref<24x1xf32, #tpu.memory_space<vmem>>, vector<24x1xf32>
    %cst_21 = arith.constant 5.000000e-01 : f32
    %32 = vector.broadcast %cst_21 : f32 to vector<24x1xf32>
    %33 = arith.cmpf ogt, %31, %32 : vector<24x1xf32>
    %cst_22 = arith.constant -1.000000e+30 : f32
    %34 = vector.shape_cast %33 : vector<24x1xi1> to vector<24x1xi1>
    %35 = vector.broadcast %34 : vector<24x1xi1> to vector<24x64xi1>
    %36 = vector.broadcast %cst_22 : f32 to vector<24x64xf32>
    %37 = arith.select %35, %30, %36 : vector<24x64xi1>, vector<24x64xf32>
    %38 = vector.shape_cast %37 : vector<24x64xf32> to vector<3x8x64xf32>
    %cst_23 = arith.constant dense<0xFF800000> : vector<3x64xf32>
    %39 = vector.multi_reduction <maximumf>, %38, %cst_23 [1] : vector<3x8x64xf32> to vector<3x64xf32>
    %c0_24 = arith.constant 0 : index
    %c0_25 = arith.constant 0 : index
    %40 = vector.load %arg9[%c0_24, %c0_25] : memref<3x64xf32, #tpu.memory_space<vmem>>, vector<3x64xf32>
    tpu.vector_store %arg9[%c0_24, %c0_25], %39 {strides = array<i32>} : memref<3x64xf32, #tpu.memory_space<vmem>>, vector<3x64xf32>,
    return
  }
}

</mosaic_0001>

<llo_original>
// kernel: tpu_custom_call.1
$region0: #{tpu_custom_call.1}
  #allocation0 [shape = 'u32[]', space=smem, size = 0x4, offset = 0x4, fixed_abs, tag = 'smem constant byte address 0x4 - core index']
  #allocation1 [shape = 'u32[144,128]{1,0:T(1,128)}', space=vmem, size = 0x12000, scoped, tag = 'internal scratch']
  %s0 = inlined_call_operand.vmem [shape: bf16[24,64], index: 0, kind: input, shape index: {}]
  %s1 = inlined_call_operand.vmem [shape: f32[24,2], index: 1, kind: input, shape index: {}]
  %s2 = inlined_call_operand.vmem [shape: f32[24,2], index: 2, kind: input, shape index: {}]
  %s3 = inlined_call_operand.vmem [shape: f32[24,1], index: 3, kind: input, shape index: {}]
  %s4 = inlined_call_operand.vmem [shape: f32[2,64], index: 4, kind: input, shape index: {}]
  %s5 = inlined_call_operand.vmem [shape: f32[1,64], index: 5, kind: input, shape index: {}]
  %s6 = inlined_call_operand.vmem [shape: bf16[64,64], index: 6, kind: input, shape index: {}]
  %s7 = inlined_call_operand.vmem [shape: bf16[64,64], index: 7, kind: input, shape index: {}]
  %s8 = inlined_call_operand.vmem [shape: f32[1,64], index: 8, kind: input, shape index: {}]
  %s9 = inlined_call_operand.hbm [shape: f32[3,64], index: 9, kind: output, shape index: {}]
  %s10 = sld [smem:[#allocation0]]
  $region46: #{tpu_custom_call.1} parent=0
    _
  %s12 = ssub.s32 1, %s10
  %s13 = scalar_select 0, %s12, %s10
  $region1: #{tpu_custom_call.1} parent=0
    #allocation2 [shape = 'u8[2048]{0}', space=vmem, size = 0x800, scoped, tag = 'output window, operand 0, single buffered']
    #allocation3 [shape = 's32[1]{0}', space=sflag, size = 0x4, scoped, tag = 'scoped memory for tpu_custom_call.1']
    %14 = vsyncpa [#allocation3], 0
    // Predicated region
    $region2: #{tpu_custom_call.1} parent=1 // pred_check
      _
    $region3: #{tpu_custom_call.1} parent=1 // pred_check_branch
      %16 = sbr.rel (0) target = $region5
    $region4: #{tpu_custom_call.1} parent=1 // pred_region
      _
    $region5: #{tpu_custom_call.1} parent=1 // pred_fallthru
      _
    // Predicated region
    $region6: #{tpu_custom_call.1} parent=1 // pred_check
      _
    $region7: #{tpu_custom_call.1} parent=1 // pred_check_branch
      %18 = sbr.rel (0) target = $region9
    $region8: #{tpu_custom_call.1} parent=1 // pred_region
      _
    $region9: #{tpu_custom_call.1} parent=1 // pred_fallthru
      _
    // Predicated region
    $region10: #{tpu_custom_call.1} parent=1 // pred_check
      _
    $region11: #{tpu_custom_call.1} parent=1 // pred_check_branch
      %20 = sbr.rel (0) target = $region13
    $region12: #{tpu_custom_call.1} parent=1 // pred_region
      _
    $region13: #{tpu_custom_call.1} parent=1 // pred_fallthru
      _
    // Predicated region
    $region14: #{tpu_custom_call.1} parent=1 // pred_check
      _
    $region15: #{tpu_custom_call.1} parent=1 // pred_check_branch
      %22 = sbr.rel (0) target = $region17
    $region16: #{tpu_custom_call.1} parent=1 // pred_region
      _
    $region17: #{tpu_custom_call.1} parent=1 // pred_fallthru
      _
    // Predicated region
    $region18: #{tpu_custom_call.1} parent=1 // pred_check
      _
    $region19: #{tpu_custom_call.1} parent=1 // pred_check_branch
      %24 = sbr.rel (0) target = $region21
    $region20: #{tpu_custom_call.1} parent=1 // pred_region
      _
    $region21: #{tpu_custom_call.1} parent=1 // pred_fallthru
      _
    // Predicated region
    $region22: #{tpu_custom_call.1} parent=1 // pred_check
      _
    $region23: #{tpu_custom_call.1} parent=1 // pred_check_branch
      %26 = sbr.rel (0) target = $region25
    $region24: #{tpu_custom_call.1} parent=1 // pred_region
      _
    $region25: #{tpu_custom_call.1} parent=1 // pred_fallthru
      _
    // Predicated region
    $region26: #{tpu_custom_call.1} parent=1 // pred_check
      _
    $region27: #{tpu_custom_call.1} parent=1 // pred_check_branch
      %28 = sbr.rel (0) target = $region29
    $region28: #{tpu_custom_call.1} parent=1 // pred_region
      _
    $region29: #{tpu_custom_call.1} parent=1 // pred_fallthru
      _
    // Predicated region
    $region30: #{tpu_custom_call.1} parent=1 // pred_check
      _
    $region31: #{tpu_custom_call.1} parent=1 // pred_check_branch
      %30 = sbr.rel (0) target = $region33
    $region32: #{tpu_custom_call.1} parent=1 // pred_region
      _
    $region33: #{tpu_custom_call.1} parent=1 // pred_fallthru
      _
    // Predicated region
    $region34: #{tpu_custom_call.1} parent=1 // pred_check
      _
    $region35: #{tpu_custom_call.1} parent=1 // pred_check_branch
      %32 = sbr.rel (0) target = $region37
    $region36: #{tpu_custom_call.1} parent=1 // pred_region
      _
    $region37: #{tpu_custom_call.1} parent=1 // pred_fallthru
      _
    %v34 = vld [vmem:[%s1] sm:$0xff]
    %v35 = vld [vmem:[%s1 + $0x8] sm:$0xff]
    %v36 = vld [vmem:[%s1 + $0x10] sm:$0xff]
    %v37 = vld [vmem:[%s2] sm:$0xff]
    %v38 = vld [vmem:[%s2 + $0x8] sm:$0xff]
    %v39 = vld [vmem:[%s2 + $0x10] sm:$0xff]
    %v40 = vsub.f32 %v34, %v37
    %v41 = vsub.f32 %v35, %v38
    %v42 = vsub.f32 %v36, %v39
    %v43 = vld [vmem:[%s4] sm:$0x1]
    %45 = vset.pattern.permute.xlu0 0
    %46 = vperm.xlu0 %45, %v40
    %v47 = vpop.permute.xlu0 %46
    %50 = vset.pattern.permute.xlu0 0
    %51 = vperm.xlu0 %50, %v41
    %v52 = vpop.permute.xlu0 %51
    %55 = vset.pattern.permute.xlu0 0
    %56 = vperm.xlu0 %55, %v42
    %v57 = vpop.permute.xlu0 %56
    %v59 = vlaneseq
    %v60 = vshrl.u32 %v59, 7
    %v61 = vsub.s32 0, %v60
    %v62 = vrot.slane %v43, %v61
    %v63 = vmul.f32 %v47, %v62
    %v64 = vmul.f32 %v52, %v62
    %v65 = vmul.f32 %v57, %v62
    %v66 = vld [vmem:[%s4 + $0x1] sm:$0x1]
    %67 = vset.pattern.permute.xlu0 1
    %68 = vperm.xlu0 %67, %v40
    %v69 = vpop.permute.xlu0 %68
    %71 = vset.pattern.permute.xlu0 1
    %72 = vperm.xlu0 %71, %v41
    %v73 = vpop.permute.xlu0 %72
    %75 = vset.pattern.permute.xlu0 1
    %76 = vperm.xlu0 %75, %v42
    %v77 = vpop.permute.xlu0 %76
    %v79 = vlaneseq
    %v80 = vshrl.u32 %v79, 7
    %v81 = vsub.s32 0, %v80
    %v82 = vrot.slane %v66, %v81
    %v83 = vmul.f32 %v69, %v82
    %v84 = vmul.f32 %v73, %v82
    %v85 = vmul.f32 %v77, %v82
    %v86 = vadd.f32 %v63, %v83
    %v87 = vadd.f32 %v64, %v84
    %v88 = vadd.f32 %v65, %v85
    %v89 = vld [vmem:[%s5] sm:$0x1]
    %v91 = vlaneseq
    %v92 = vshrl.u32 %v91, 7
    %v93 = vsub.s32 0, %v92
    %v94 = vrot.slane %v89, %v93
    %v96 = vadd.f32 %v86, %v94
    %v97 = vadd.f32 %v87, %v94
    %v98 = vadd.f32 %v88, %v94
    %v99 = vmax.f32 %v96, 0.0
    %v100 = vmax.f32 %v97, 0.0
    %v101 = vmax.f32 %v98, 0.0
    %v102 = vld [vmem:[%s0] sm:$0xf]
    %v103 = vld [vmem:[%s0 + $0x4] sm:$0xf]
    %v104 = vld [vmem:[%s0 + $0x8] sm:$0xf]
    %v105 = vld [vmem:[%s6] sm:$0xf]
    %v106 = vld [vmem:[%s6 + $0x4] sm:$0xf]
    %v107 = vld [vmem:[%s6 + $0x8] sm:$0xf]
    %v108 = vld [vmem:[%s6 + $0xc] sm:$0xf]
    %v109 = vld [vmem:[%s6 + $0x10] sm:$0xf]
    %v110 = vld [vmem:[%s6 + $0x14] sm:$0xf]
    %v111 = vld [vmem:[%s6 + $0x18] sm:$0xf]
    %v112 = vld [vmem:[%s6 + $0x1c] sm:$0xf]
    %v113 = vpack.c.bf16 %v100, %v99
    %v114 = vpack.c.bf16 %v101, %v101
    %v115 = vld [vmem:[%s7] sm:$0xf]
    %v116 = vld [vmem:[%s7 + $0x4] sm:$0xf]
    %v117 = vld [vmem:[%s7 + $0x8] sm:$0xf]
    %v118 = vld [vmem:[%s7 + $0xc] sm:$0xf]
    %v119 = vld [vmem:[%s7 + $0x10] sm:$0xf]
    %v120 = vld [vmem:[%s7 + $0x14] sm:$0xf]
    %v121 = vld [vmem:[%s7 + $0x18] sm:$0xf]
    %v122 = vld [vmem:[%s7 + $0x1c] sm:$0xf]
    %v131 = vunpack.c.l.b16 %v115
    %v132 = vunpack.c.l.b16 %v116
    %v133 = vunpack.c.l.b16 %v117
    %v134 = vunpack.c.l.b16 %v118
    %v135 = vunpack.c.l.b16 %v119
    %v136 = vunpack.c.l.b16 %v120
    %v137 = vunpack.c.l.b16 %v121
    %v138 = vunpack.c.l.b16 %v122
    %v139 = vpack.c.b16 %v132, %v131
    %v140 = vpack.c.b16 %v134, %v133
    %v141 = vpack.c.b16 %v136, %v135
    %v142 = vpack.c.b16 %v138, %v137
    %vm147 = vcmask 523264
    %v149 = vsel %vm147, %v113, 0
    %v152 = vsel %vm147, %v114, 0
    %154 = vmatprep.subr.bf16.mxu0 0
    %155 = vmatpush1.bf16.msra.mxu0 0
    %156 = vmatprep.subr.bf16.mxu0 0
    %157 = vmatpush1.bf16.msra.mxu0 0
    %158 = vmatprep.subr.bf16.mxu0 0
    %159 = vmatpush1.bf16.msra.mxu0 0
    %160 = vmatprep.subr.bf16.mxu0 0
    %161 = vmatpush1.bf16.msra.mxu0 0
    %162 = vmatprep.subr.bf16.mxu0 0
    %163 = vmatpush1.bf16.msra.mxu0 %v142
    %164 = vmatprep.subr.bf16.mxu0 0
    %165 = vmatpush1.bf16.msra.mxu0 %v141
    %166 = vmatprep.subr.bf16.mxu0 0
    %167 = vmatpush1.bf16.msra.mxu0 %v140
    %168 = vmatprep.subr.bf16.mxu0 0
    %169 = vmatpush1.bf16.msra.mxu0 %v139
    %170 = vmatprep.subr.bf16.mxu0 0
    %171 = vmatpush2.bf16.msra.mxu0 0
    %172 = vmatprep.subr.bf16.mxu0 0
    %173 = vmatpush2.bf16.msra.mxu0 0
    %174 = vmatprep.subr.bf16.mxu0 0
    %175 = vmatpush2.bf16.msra.mxu0 0
    %176 = vmatprep.subr.bf16.mxu0 0
    %177 = vmatpush2.bf16.msra.mxu0 0
    %178 = vmatprep.subr.bf16.mxu0 0
    %179 = vmatpush2.bf16.msra.mxu0 0
    %180 = vmatprep.subr.bf16.mxu0 0
    %181 = vmatpush2.bf16.msra.mxu0 0
    %182 = vmatprep.subr.bf16.mxu0 0
    %183 = vmatpush2.bf16.msra.mxu0 0
    %184 = vmatprep.subr.bf16.mxu0 0
    %185 = vmatpush2.bf16.msra.mxu0 0
    %186 = vmatprep.mubr.bf16.mxu0 0
    %187 = vmatmul.mubr.bf16.gmra.mxu0 %v149
    %v188 = vpop.f32.mrf.mxu0
    %v189 = vadd.f32 0.0, %v188
    %v190 = vpop.f32.mrf.mxu0
    %v191 = vpop.f32.mrf.mxu0
    %v192 = vadd.f32 0.0, %v191
    %v193 = vpop.f32.mrf.mxu0
    %194 = vmatprep.mubr.bf16.mxu0 0
    %195 = vmatmul.mubr.bf16.gmra.mxu0 %v152
    %v196 = vpop.f32.mrf.mxu0
    %v197 = vadd.f32 0.0, %v196
    %v198 = vpop.f32.mrf.mxu0
    %v199 = vpop.f32.mrf.mxu0
    %v200 = vpop.f32.mrf.mxu0
    %201 = vdwg.mxu0
    %v205 = vunpack.c.l.b16 %v102
    %v206 = vunpack.c.l.b16 %v103
    %v207 = vunpack.c.l.b16 %v104
    %v208 = vpack.c.b16 %v206, %v205
    %v209 = vpack.c.b16 %v207, %v207
    %v218 = vunpack.c.l.b16 %v105
    %v219 = vunpack.c.l.b16 %v106
    %v220 = vunpack.c.l.b16 %v107
    %v221 = vunpack.c.l.b16 %v108
    %v222 = vunpack.c.l.b16 %v109
    %v223 = vunpack.c.l.b16 %v110
    %v224 = vunpack.c.l.b16 %v111
    %v225 = vunpack.c.l.b16 %v112
    %v226 = vpack.c.b16 %v219, %v218
    %v227 = vpack.c.b16 %v221, %v220
    %v228 = vpack.c.b16 %v223, %v222
    %v229 = vpack.c.b16 %v225, %v224
    %v235 = vsel %vm147, %v208, 0
    %v238 = vsel %vm147, %v209, 0
    %240 = vmatprep.subr.bf16.mxu0 0
    %241 = vmatpush1.bf16.msra.mxu0 0
    %242 = vmatprep.subr.bf16.mxu0 0
    %243 = vmatpush1.bf16.msra.mxu0 0
    %244 = vmatprep.subr.bf16.mxu0 0
    %245 = vmatpush1.bf16.msra.mxu0 0
    %246 = vmatprep.subr.bf16.mxu0 0
    %247 = vmatpush1.bf16.msra.mxu0 0
    %248 = vmatprep.subr.bf16.mxu0 0
    %249 = vmatpush1.bf16.msra.mxu0 %v229
    %250 = vmatprep.subr.bf16.mxu0 0
    %251 = vmatpush1.bf16.msra.mxu0 %v228
    %252 = vmatprep.subr.bf16.mxu0 0
    %253 = vmatpush1.bf16.msra.mxu0 %v227
    %254 = vmatprep.subr.bf16.mxu0 0
    %255 = vmatpush1.bf16.msra.mxu0 %v226
    %256 = vmatprep.subr.bf16.mxu0 0
    %257 = vmatpush2.bf16.msra.mxu0 0
    %258 = vmatprep.subr.bf16.mxu0 0
    %259 = vmatpush2.bf16.msra.mxu0 0
    %260 = vmatprep.subr.bf16.mxu0 0
    %261 = vmatpush2.bf16.msra.mxu0 0
    %262 = vmatprep.subr.bf16.mxu0 0
    %263 = vmatpush2.bf16.msra.mxu0 0
    %264 = vmatprep.subr.bf16.mxu0 0
    %265 = vmatpush2.bf16.msra.mxu0 0
    %266 = vmatprep.subr.bf16.mxu0 0
    %267 = vmatpush2.bf16.msra.mxu0 0
    %268 = vmatprep.subr.bf16.mxu0 0
    %269 = vmatpush2.bf16.msra.mxu0 0
    %270 = vmatprep.subr.bf16.mxu0 0
    %271 = vmatpush2.bf16.msra.mxu0 0
    %272 = vmatprep.mubr.bf16.mxu0 0
    %273 = vmatmul.mubr.bf16.gmra.mxu0 %v235
    %v274 = vpop.f32.mrf.mxu0
    %v275 = vadd.f32 %v189, %v274
    %v276 = vpop.f32.mrf.mxu0
    %v277 = vpop.f32.mrf.mxu0
    %v278 = vadd.f32 %v192, %v277
    %v279 = vpop.f32.mrf.mxu0
    %280 = vmatprep.mubr.bf16.mxu0 0
    %281 = vmatmul.mubr.bf16.gmra.mxu0 %v238
    %v282 = vpop.f32.mrf.mxu0
    %v283 = vadd.f32 %v197, %v282
    %v284 = vpop.f32.mrf.mxu0
    %v285 = vpop.f32.mrf.mxu0
    %v286 = vpop.f32.mrf.mxu0
    %287 = vdwg.mxu0
    %v288 = vld [vmem:[%s8] sm:$0x1]
    %v290 = vlaneseq
    %v291 = vshrl.u32 %v290, 7
    %v292 = vsub.s32 0, %v291
    %v293 = vrot.slane %v288, %v292
    %v295 = vadd.f32 %v275, %v293
    %v296 = vadd.f32 %v278, %v293
    %v297 = vadd.f32 %v283, %v293
    %v298 = vmax.f32 %v295, 0.0
    %v299 = vmax.f32 %v296, 0.0
    %v300 = vmax.f32 %v297, 0.0
    %v301 = vld [vmem:[%s3] sm:$0xff]
    %v302 = vld [vmem:[%s3 + $0x8] sm:$0xff]
    %v303 = vld [vmem:[%s3 + $0x10] sm:$0xff]
    %vm304 = vcmp.gt.f32.partialorder %v301, 0.5
    %vm305 = vcmp.gt.f32.partialorder %v302, 0.5
    %vm306 = vcmp.gt.f32.partialorder %v303, 0.5
    %v307 = vsel %vm304, 1, 0
    %v308 = vsel %vm305, 1, 0
    %v309 = vsel %vm306, 1, 0
    %310 = vset.pattern.permute.xlu0 0
    %311 = vperm.xlu0 %310, %v307
    %v312 = vpop.permute.xlu0 %311
    %313 = vset.pattern.permute.xlu0 0
    %314 = vperm.xlu0 %313, %v308
    %v315 = vpop.permute.xlu0 %314
    %316 = vset.pattern.permute.xlu0 0
    %317 = vperm.xlu0 %316, %v309
    %v318 = vpop.permute.xlu0 %317
    %vm319 = vcmp.eq.s32.totalorder %v312, 1
    %vm320 = vcmp.eq.s32.totalorder %v315, 1
    %vm321 = vcmp.eq.s32.totalorder %v318, 1
    %v322 = vsel %vm319, %v298, -1e+30
    %v323 = vsel %vm320, %v299, -1e+30
    %v324 = vsel %vm321, %v300, -1e+30
    %v325 = vsel %vm147, %v322, -inf
    %v326 = vrot.slane %v325, 4
    %v327 = vmax.f32 %v325, %v326
    %v328 = vrot.slane %v327, 2
    %v329 = vmax.f32 %v327, %v328
    %v330 = vrot.slane %v329, 1
    %v331 = vmax.f32 %v329, %v330
    %v332 = vsel %vm147, %v323, -inf
    %v333 = vrot.slane %v332, 4
    %v334 = vmax.f32 %v332, %v333
    %v335 = vrot.slane %v334, 2
    %v336 = vmax.f32 %v334, %v335
    %v337 = vrot.slane %v336, 1
    %v338 = vmax.f32 %v336, %v337
    %v339 = vsel %vm147, %v324, -inf
    %v340 = vrot.slane %v339, 4
    %v341 = vmax.f32 %v339, %v340
    %v342 = vrot.slane %v341, 2
    %v343 = vmax.f32 %v341, %v342
    %v344 = vrot.slane %v343, 1
    %v345 = vmax.f32 %v343, %v344
    %vm349 = vcmask 1041409
    %v350 = vsel %vm349, %v338, %v331
    %vm351 = vcmask 1042434
    %v352 = vsel %vm351, %v345, %v350
    %vm354 = vcmask 518144
    %355 = vst.msk [vmem:[#allocation2] sm:$0x7] %vm354, %v352
    // Predicated region
    $region38: #{tpu_custom_call.1} parent=1 // pred_check
      _
    $region39: #{tpu_custom_call.1} parent=1 // pred_check_branch
      %357 = sbr.rel (0) target = $region41
    $region40: #{tpu_custom_call.1} parent=1 // pred_region
      %s359 = ssub.s32 64, 64
      %360 = vsyncadd [#allocation3], %s359
      %s362 = sshll.u32 [#allocation2], 4
      %s363 = int_to_ptr.vmem [resolvable:$true] %s362
      %365 = dma.vmem_to_hbm [thread:$0]  %s363, 64, %s9, [#allocation3]
    $region41: #{tpu_custom_call.1} parent=1 // pred_fallthru
      _
    // Predicated region
    $region42: #{tpu_custom_call.1} parent=1 // pred_check
      _
    $region43: #{tpu_custom_call.1} parent=1 // pred_check_branch
      %367 = sbr.rel (0) target = $region45
    $region44: #{tpu_custom_call.1} parent=1 // pred_region
      %368 = dma.done [#allocation3], 64
    $region45: #{tpu_custom_call.1} parent=1 // pred_fallthru
      _
    %369 = vsyncpa [#allocation3], 1

</llo_original>
